<compile_context>
chip_gen: v5e
topology: v5e:2x2
jax: 0.10.0
libtpu: 0.0.40
codegen_flags: <defaults>
</compile_context>

<pallas_src>
import functools

import jax
import jax.numpy as jnp
from jax.experimental import pallas as pl
from jax.experimental.pallas import tpu as pltpu

_NEG_BIG = -1e30  # finite "-inf" stand-in (avoids inf-inf NaNs on padded data)


def _ls_loss_kernel(x_ref, t_ref, out_ref,
                    m_sc, l_sc, s_sc, g_sc, *,
                    confidence, smoothing, n_cls, n_rows,
                    c_tile, b_tile, c_ragged, b_ragged):
    # Program ids ONLY at top level (never bound inside pl.when bodies).
    i = pl.program_id(0)          # B-tile index ("parallel")
    j = pl.program_id(1)          # C-chunk index (reduction axis, last in grid)
    n_c = pl.num_programs(1)

    @pl.when(j == 0)
    def _init():
        m_sc[...] = jnp.full(m_sc.shape, _NEG_BIG, jnp.float32)  # running max
        l_sc[...] = jnp.zeros(l_sc.shape, jnp.float32)           # running sum exp(x-m)
        s_sc[...] = jnp.zeros(s_sc.shape, jnp.float32)           # running sum(x)
        g_sc[...] = jnp.zeros(g_sc.shape, jnp.float32)           # running x[target]

    x = x_ref[...].astype(jnp.float32)                  # (b_tile, c_tile)
    # Chunk-local column iota; compare against *shifted* operands instead of
    # adding j*c_tile to every element.
    col = jax.lax.broadcasted_iota(jnp.int32, x.shape, 1)
    tgt_local = t_ref[...] - j * c_tile                 # (b_tile, 1) int32

    def _accumulate(x_m, x_z):
        # online logsumexp update
        chunk_max = jnp.max(x_m, axis=-1, keepdims=True)
        m_prev = m_sc[...]
        m_new = jnp.maximum(m_prev, chunk_max)
        alpha = jnp.exp(m_prev - m_new)
        l_sc[...] = alpha * l_sc[...] + jnp.sum(jnp.exp(x_m - m_new),
                                                axis=-1, keepdims=True)
        m_sc[...] = m_new
        # running sum over classes and gather-via-select of x[target]
        s_sc[...] += jnp.sum(x_z, axis=-1, keepdims=True)
        g_sc[...] += jnp.sum(jnp.where(col == tgt_local, x_z, 0.0),
                             axis=-1, keepdims=True)

    if c_ragged:
        # Only the last C chunk can contain out-of-range columns; keep the
        # masking work off the full-chunk hot path.
        @pl.when(j < n_c - 1)
        def _full_chunk():
            _accumulate(x, x)

        @pl.when(j == n_c - 1)
        def _ragged_chunk():
            valid = col < (n_cls - j * c_tile)
            _accumulate(jnp.where(valid, x, _NEG_BIG),
                        jnp.where(valid, x, 0.0))
    else:
        _accumulate(x, x)

    @pl.when(j == n_c - 1)
    def _finalize():
        lse = jnp.log(l_sc[...])
        # conf*(m+lse - x[t]) + smooth*(m+lse - sum(x)/C), with conf+smooth == 1
        loss = (m_sc[...] + lse
                - confidence * g_sc[...]
                - (smoothing / n_cls) * s_sc[...])
        if b_ragged:
            row = jax.lax.broadcasted_iota(jnp.int32, loss.shape, 0) + i * b_tile
            loss = jnp.where(row < n_rows, loss, 0.0)
        out_ref[...] = loss


def _round_up(a, m):
    return (a + m - 1) // m * m


def label_smoothing_loss(x, target, smoothing=0.01):
    """x: (B, C) float logits; target: (B,) int labels. Returns scalar f32 mean loss."""
    B, C = x.shape
    confidence = 1.0 - smoothing

    # Row (batch) tiling: multiples of 8 sublanes; keep >= 2 "parallel" tiles
    # when B > 128 so v7x's two TensorCores both get work.
    b_al = _round_up(B, 8)
    if b_al >= 512:
        b_tile = 256
    elif b_al > 128:
        b_tile = 128
    else:
        b_tile = b_al
    n_b = pl.cdiv(B, b_tile)
    b_pad = n_b * b_tile

    # Class (vocab) tiling: lane-dense chunks, large to amortize per-step cost.
    c_tile = min(8192, _round_up(C, 128))
    n_c = pl.cdiv(C, c_tile)

    t2 = target.astype(jnp.int32).reshape(B, 1)

    kernel = functools.partial(
        _ls_loss_kernel,
        confidence=float(confidence),
        smoothing=float(smoothing),
        n_cls=int(C),
        n_rows=int(B),
        c_tile=int(c_tile),
        b_tile=int(b_tile),
        c_ragged=bool(C % c_tile != 0),
        b_ragged=bool(B % b_tile != 0),
    )

    cost = pl.CostEstimate(
        flops=6 * B * C,
        transcendentals=B * C,
        bytes_accessed=int(B * C * x.dtype.itemsize + B * 4 + b_pad * 4),
    )

    per_row = pl.pallas_call(
        kernel,
        out_shape=jax.ShapeDtypeStruct((b_pad, 1), jnp.float32),
        grid_spec=pltpu.PrefetchScalarGridSpec(
            num_scalar_prefetch=0,
            grid=(n_b, n_c),
            in_specs=[
                pl.BlockSpec((b_tile, c_tile), lambda i, j: (i, j)),
                pl.BlockSpec((b_tile, 1), lambda i, j: (i, 0)),
            ],
            out_specs=pl.BlockSpec((b_tile, 1), lambda i, j: (i, 0)),
            scratch_shapes=[pltpu.VMEM((b_tile, 1), jnp.float32)] * 4,
        ),
        compiler_params=pltpu.CompilerParams(
            dimension_semantics=("parallel", "arbitrary"),
            # No vmem_limit_bytes override: worst-case need (~16 MiB) fits the
            # default scoped VMEM limit on v5e/v6e/v7x.
        ),
        cost_estimate=cost,
    )(x, t2)

    # Out-of-range rows (if any) were zeroed inside the kernel; mean over real B.
    return jnp.sum(per_row) / jnp.float32(B)


def _reference(x, target, smoothing):
    log_probs = jax.nn.log_softmax(x, axis=-1)
    nll = -jnp.take_along_axis(log_probs, target[:, None], axis=-1)[:, 0]
    smooth = -jnp.mean(log_probs, axis=-1)
    return jnp.mean((1.0 - smoothing) * nll + smoothing * smooth)


if __name__ == "__main__":
    key = jax.random.PRNGKey(0)
    kx, kt, kx2, kt2 = jax.random.split(key, 4)

    # Small shapes consistent with the module: batch=8, num_classes=32.
    B, C = 8, 32
    x = jax.random.normal(kx, (B, C), dtype=jnp.float32)
    target = jax.random.randint(kt, (B,), 0, C, dtype=jnp.int32)

    loss = jax.block_until_ready(label_smoothing_loss(x, target, smoothing=0.01))
    ref = _reference(x, target, 0.01)
    assert jnp.allclose(loss, ref, atol=1e-5, rtol=1e-5), (loss, ref)

    # Second check exercising multi-tile / ragged paths: 2 B tiles (ragged last
    # row tile) and 2 C chunks (ragged last chunk).
    B2, C2 = 200, 9000
    x2 = jax.random.normal(kx2, (B2, C2), dtype=jnp.float32)
    t2 = jax.random.randint(kt2, (B2,), 0, C2, dtype=jnp.int32)
    loss2 = jax.block_until_ready(label_smoothing_loss(x2, t2, smoothing=0.01))
    ref2 = _reference(x2, t2, 0.01)
    assert jnp.allclose(loss2, ref2, atol=1e-4, rtol=1e-4), (loss2, ref2)

    print("KERNEL_OK")
</pallas_src>

<mosaic_0001>
module attributes {stable_mosaic.version = 11 : i64} {
  func.func @_ls_loss_kernel(%arg0: i32, %arg1: i32, %arg2: memref<8x128xf32, #tpu.memory_space<vmem>>, %arg3: memref<8x1xi32, #tpu.memory_space<vmem>>, %arg4: memref<8x1xf32, #tpu.memory_space<vmem>>, %arg5: memref<8x1xf32, #tpu.memory_space<vmem>>, %arg6: memref<8x1xf32, #tpu.memory_space<vmem>>, %arg7: memref<8x1xf32, #tpu.memory_space<vmem>>, %arg8: memref<8x1xf32, #tpu.memory_space<vmem>>) attributes {dimension_semantics = [#tpu.dimension_semantics<parallel>, #tpu.dimension_semantics<arbitrary>], iteration_bounds = array<i64: 1, 1>, scalar_prefetch = 0 : i64, scratch_operands = 4 : i64, tpu.core_type = #tpu.core_type<tc>, window_params = [{transform_indices = @transform_0, window_bounds = array<i64: 8, 128>}, {transform_indices = @transform_1, window_bounds = array<i64: 8, 1>}, {transform_indices = @transform_2, window_bounds = array<i64: 8, 1>}]} {
    %c0_i32 = arith.constant 0 : i32
    %0 = arith.cmpi eq, %arg1, %c0_i32 : i32
    %1 = arith.extui %0 : i1 to i32
    %c0_i32_0 = arith.constant 0 : i32
    %2 = arith.cmpi ne, %1, %c0_i32_0 : i32
    scf.if %2 {
      %cst = arith.constant -1.000000e+30 : f32
      %18 = vector.broadcast %cst : f32 to vector<8x1xf32>
      %c0_10 = arith.constant 0 : index
      %c0_11 = arith.constant 0 : index
      %19 = vector.load %arg5[%c0_10, %c0_11] : memref<8x1xf32, #tpu.memory_space<vmem>>, vector<8x1xf32>
      tpu.vector_store %arg5[%c0_10, %c0_11], %18 {strides = array<i32>} : memref<8x1xf32, #tpu.memory_space<vmem>>, vector<8x1xf32>,
      %cst_12 = arith.constant 0.000000e+00 : f32
      %20 = vector.broadcast %cst_12 : f32 to vector<8x1xf32>
      %c0_13 = arith.constant 0 : index
      %c0_14 = arith.constant 0 : index
      %21 = vector.load %arg6[%c0_13, %c0_14] : memref<8x1xf32, #tpu.memory_space<vmem>>, vector<8x1xf32>
      tpu.vector_store %arg6[%c0_13, %c0_14], %20 {strides = array<i32>} : memref<8x1xf32, #tpu.memory_space<vmem>>, vector<8x1xf32>,
      %cst_15 = arith.constant 0.000000e+00 : f32
      %22 = vector.broadcast %cst_15 : f32 to vector<8x1xf32>
      %c0_16 = arith.constant 0 : index
      %c0_17 = arith.constant 0 : index
      %23 = vector.load %arg7[%c0_16, %c0_17] : memref<8x1xf32, #tpu.memory_space<vmem>>, vector<8x1xf32>
      tpu.vector_store %arg7[%c0_16, %c0_17], %22 {strides = array<i32>} : memref<8x1xf32, #tpu.memory_space<vmem>>, vector<8x1xf32>,
      %cst_18 = arith.constant 0.000000e+00 : f32
      %24 = vector.broadcast %cst_18 : f32 to vector<8x1xf32>
      %c0_19 = arith.constant 0 : index
      %c0_20 = arith.constant 0 : index
      %25 = vector.load %arg8[%c0_19, %c0_20] : memref<8x1xf32, #tpu.memory_space<vmem>>, vector<8x1xf32>
      tpu.vector_store %arg8[%c0_19, %c0_20], %24 {strides = array<i32>} : memref<8x1xf32, #tpu.memory_space<vmem>>, vector<8x1xf32>,
    } else {
    }
    %c0 = arith.constant 0 : index
    %c0_1 = arith.constant 0 : index
    %3 = vector.load %arg2[%c0, %c0_1] : memref<8x128xf32, #tpu.memory_space<vmem>>, vector<8x128xf32>
    %4 = tpu.iota {dimensions = array<i32: 1>} : vector<8x128xi32>
    %c0_2 = arith.constant 0 : index
    %c0_3 = arith.constant 0 : index
    %5 = vector.load %arg3[%c0_2, %c0_3] : memref<8x1xi32, #tpu.memory_space<vmem>>, vector<8x1xi32>
    %c128_i32 = arith.constant 128 : i32
    %6 = arith.muli %arg1, %c128_i32 : i32
    %7 = vector.broadcast %6 : i32 to vector<8x1xi32>
    %8 = arith.subi %5, %7 : vector<8x1xi32>
    %c0_i32_4 = arith.constant 0 : i32
    %9 = arith.cmpi slt, %arg1, %c0_i32_4 : i32
    %10 = arith.extui %9 : i1 to i32
    %c0_i32_5 = arith.constant 0 : i32
    %11 = arith.cmpi ne, %10, %c0_i32_5 : i32
    scf.if %11 {
      %cst = arith.constant dense<0xFF800000> : vector<8xf32>
      %18 = vector.multi_reduction <maximumf>, %3, %cst [1] : vector<8x128xf32> to vector<8xf32>
      %19 = vector.shape_cast %18 : vector<8xf32> to vector<8x1xf32>
      %c0_10 = arith.constant 0 : index
      %c0_11 = arith.constant 0 : index
      %20 = vector.load %arg5[%c0_10, %c0_11] : memref<8x1xf32, #tpu.memory_space<vmem>>, vector<8x1xf32>
      %21 = arith.maximumf %20, %19 : vector<8x1xf32>
      %22 = arith.subf %20, %21 : vector<8x1xf32>
      %23 = math.exp %22 : vector<8x1xf32>
      %c0_12 = arith.constant 0 : index
      %c0_13 = arith.constant 0 : index
      %24 = vector.load %arg6[%c0_12, %c0_13] : memref<8x1xf32, #tpu.memory_space<vmem>>, vector<8x1xf32>
      %25 = arith.mulf %23, %24 : vector<8x1xf32>
      %26 = vector.broadcast %21 : vector<8x1xf32> to vector<8x128xf32>
      %27 = arith.subf %3, %26 : vector<8x128xf32>
      %28 = math.exp %27 : vector<8x128xf32>
      %cst_14 = arith.constant dense<0.000000e+00> : vector<8xf32>
      %29 = vector.multi_reduction <add>, %28, %cst_14 [1] : vector<8x128xf32> to vector<8xf32>
      %30 = vector.shape_cast %29 : vector<8xf32> to vector<8x1xf32>
      %31 = arith.addf %25, %30 : vector<8x1xf32>
      %c0_15 = arith.constant 0 : index
      %c0_16 = arith.constant 0 : index
      %32 = vector.load %arg6[%c0_15, %c0_16] : memref<8x1xf32, #tpu.memory_space<vmem>>, vector<8x1xf32>
      tpu.vector_store %arg6[%c0_15, %c0_16], %31 {strides = array<i32>} : memref<8x1xf32, #tpu.memory_space<vmem>>, vector<8x1xf32>,
      %c0_17 = arith.constant 0 : index
      %c0_18 = arith.constant 0 : index
      %33 = vector.load %arg5[%c0_17, %c0_18] : memref<8x1xf32, #tpu.memory_space<vmem>>, vector<8x1xf32>
      tpu.vector_store %arg5[%c0_17, %c0_18], %21 {strides = array<i32>} : memref<8x1xf32, #tpu.memory_space<vmem>>, vector<8x1xf32>,
      %c0_19 = arith.constant 0 : index
      %c0_20 = arith.constant 0 : index
      %34 = vector.load %arg7[%c0_19, %c0_20] : memref<8x1xf32, #tpu.memory_space<vmem>>, vector<8x1xf32>
      %cst_21 = arith.constant dense<0.000000e+00> : vector<8xf32>
      %35 = vector.multi_reduction <add>, %3, %cst_21 [1] : vector<8x128xf32> to vector<8xf32>
      %36 = vector.shape_cast %35 : vector<8xf32> to vector<8x1xf32>
      %37 = arith.addf %34, %36 : vector<8x1xf32>
      %c0_22 = arith.constant 0 : index
      %c0_23 = arith.constant 0 : index
      %38 = vector.load %arg7[%c0_22, %c0_23] : memref<8x1xf32, #tpu.memory_space<vmem>>, vector<8x1xf32>
      tpu.vector_store %arg7[%c0_22, %c0_23], %37 {strides = array<i32>} : memref<8x1xf32, #tpu.memory_space<vmem>>, vector<8x1xf32>,
      %c0_24 = arith.constant 0 : index
      %c0_25 = arith.constant 0 : index
      %39 = vector.load %arg8[%c0_24, %c0_25] : memref<8x1xf32, #tpu.memory_space<vmem>>, vector<8x1xf32>
      %40 = vector.broadcast %8 : vector<8x1xi32> to vector<8x128xi32>
      %41 = arith.cmpi eq, %4, %40 : vector<8x128xi32>
      %cst_26 = arith.constant 0.000000e+00 : f32
      %42 = vector.broadcast %cst_26 : f32 to vector<8x128xf32>
      %43 = arith.select %41, %3, %42 : vector<8x128xi1>, vector<8x128xf32>
      %cst_27 = arith.constant dense<0.000000e+00> : vector<8xf32>
      %44 = vector.multi_reduction <add>, %43, %cst_27 [1] : vector<8x128xf32> to vector<8xf32>
      %45 = vector.shape_cast %44 : vector<8xf32> to vector<8x1xf32>
      %46 = arith.addf %39, %45 : vector<8x1xf32>
      %c0_28 = arith.constant 0 : index
      %c0_29 = arith.constant 0 : index
      %47 = vector.load %arg8[%c0_28, %c0_29] : memref<8x1xf32, #tpu.memory_space<vmem>>, vector<8x1xf32>
      tpu.vector_store %arg8[%c0_28, %c0_29], %46 {strides = array<i32>} : memref<8x1xf32, #tpu.memory_space<vmem>>, vector<8x1xf32>,
    } else {
    }
    %c0_i32_6 = arith.constant 0 : i32
    %12 = arith.cmpi eq, %arg1, %c0_i32_6 : i32
    %13 = arith.extui %12 : i1 to i32
    %c0_i32_7 = arith.constant 0 : i32
    %14 = arith.cmpi ne, %13, %c0_i32_7 : i32
    scf.if %14 {
      %c128_i32_10 = arith.constant 128 : i32
      %18 = arith.muli %arg1, %c128_i32_10 : i32
      %c32_i32 = arith.constant 32 : i32
      %19 = arith.subi %c32_i32, %18 : i32
      %20 = vector.broadcast %19 : i32 to vector<8x128xi32>
      %21 = arith.cmpi slt, %4, %20 : vector<8x128xi32>
      %cst = arith.constant -1.000000e+30 : f32
      %22 = vector.broadcast %cst : f32 to vector<8x128xf32>
      %23 = arith.select %21, %3, %22 : vector<8x128xi1>, vector<8x128xf32>
      %cst_11 = arith.constant 0.000000e+00 : f32
      %24 = vector.broadcast %cst_11 : f32 to vector<8x128xf32>
      %25 = arith.select %21, %3, %24 : vector<8x128xi1>, vector<8x128xf32>
      %cst_12 = arith.constant dense<0xFF800000> : vector<8xf32>
      %26 = vector.multi_reduction <maximumf>, %23, %cst_12 [1] : vector<8x128xf32> to vector<8xf32>
      %27 = vector.shape_cast %26 : vector<8xf32> to vector<8x1xf32>
      %c0_13 = arith.constant 0 : index
      %c0_14 = arith.constant 0 : index
      %28 = vector.load %arg5[%c0_13, %c0_14] : memref<8x1xf32, #tpu.memory_space<vmem>>, vector<8x1xf32>
      %29 = arith.maximumf %28, %27 : vector<8x1xf32>
      %30 = arith.subf %28, %29 : vector<8x1xf32>
      %31 = math.exp %30 : vector<8x1xf32>
      %c0_15 = arith.constant 0 : index
      %c0_16 = arith.constant 0 : index
      %32 = vector.load %arg6[%c0_15, %c0_16] : memref<8x1xf32, #tpu.memory_space<vmem>>, vector<8x1xf32>
      %33 = arith.mulf %31, %32 : vector<8x1xf32>
      %34 = vector.broadcast %29 : vector<8x1xf32> to vector<8x128xf32>
      %35 = arith.subf %23, %34 : vector<8x128xf32>
      %36 = math.exp %35 : vector<8x128xf32>
      %cst_17 = arith.constant dense<0.000000e+00> : vector<8xf32>
      %37 = vector.multi_reduction <add>, %36, %cst_17 [1] : vector<8x128xf32> to vector<8xf32>
      %38 = vector.shape_cast %37 : vector<8xf32> to vector<8x1xf32>
      %39 = arith.addf %33, %38 : vector<8x1xf32>
      %c0_18 = arith.constant 0 : index
      %c0_19 = arith.constant 0 : index
      %40 = vector.load %arg6[%c0_18, %c0_19] : memref<8x1xf32, #tpu.memory_space<vmem>>, vector<8x1xf32>
      tpu.vector_store %arg6[%c0_18, %c0_19], %39 {strides = array<i32>} : memref<8x1xf32, #tpu.memory_space<vmem>>, vector<8x1xf32>,
      %c0_20 = arith.constant 0 : index
      %c0_21 = arith.constant 0 : index
      %41 = vector.load %arg5[%c0_20, %c0_21] : memref<8x1xf32, #tpu.memory_space<vmem>>, vector<8x1xf32>
      tpu.vector_store %arg5[%c0_20, %c0_21], %29 {strides = array<i32>} : memref<8x1xf32, #tpu.memory_space<vmem>>, vector<8x1xf32>,
      %c0_22 = arith.constant 0 : index
      %c0_23 = arith.constant 0 : index
      %42 = vector.load %arg7[%c0_22, %c0_23] : memref<8x1xf32, #tpu.memory_space<vmem>>, vector<8x1xf32>
      %cst_24 = arith.constant dense<0.000000e+00> : vector<8xf32>
      %43 = vector.multi_reduction <add>, %25, %cst_24 [1] : vector<8x128xf32> to vector<8xf32>
      %44 = vector.shape_cast %43 : vector<8xf32> to vector<8x1xf32>
      %45 = arith.addf %42, %44 : vector<8x1xf32>
      %c0_25 = arith.constant 0 : index
      %c0_26 = arith.constant 0 : index
      %46 = vector.load %arg7[%c0_25, %c0_26] : memref<8x1xf32, #tpu.memory_space<vmem>>, vector<8x1xf32>
      tpu.vector_store %arg7[%c0_25, %c0_26], %45 {strides = array<i32>} : memref<8x1xf32, #tpu.memory_space<vmem>>, vector<8x1xf32>,
      %c0_27 = arith.constant 0 : index
      %c0_28 = arith.constant 0 : index
      %47 = vector.load %arg8[%c0_27, %c0_28] : memref<8x1xf32, #tpu.memory_space<vmem>>, vector<8x1xf32>
      %48 = vector.broadcast %8 : vector<8x1xi32> to vector<8x128xi32>
      %49 = arith.cmpi eq, %4, %48 : vector<8x128xi32>
      %cst_29 = arith.constant 0.000000e+00 : f32
      %50 = vector.broadcast %cst_29 : f32 to vector<8x128xf32>
      %51 = arith.select %49, %25, %50 : vector<8x128xi1>, vector<8x128xf32>
      %cst_30 = arith.constant dense<0.000000e+00> : vector<8xf32>
      %52 = vector.multi_reduction <add>, %51, %cst_30 [1] : vector<8x128xf32> to vector<8xf32>
      %53 = vector.shape_cast %52 : vector<8xf32> to vector<8x1xf32>
      %54 = arith.addf %47, %53 : vector<8x1xf32>
      %c0_31 = arith.constant 0 : index
      %c0_32 = arith.constant 0 : index
      %55 = vector.load %arg8[%c0_31, %c0_32] : memref<8x1xf32, #tpu.memory_space<vmem>>, vector<8x1xf32>
      tpu.vector_store %arg8[%c0_31, %c0_32], %54 {strides = array<i32>} : memref<8x1xf32, #tpu.memory_space<vmem>>, vector<8x1xf32>,
    } else {
    }
    %c0_i32_8 = arith.constant 0 : i32
    %15 = arith.cmpi eq, %arg1, %c0_i32_8 : i32
    %16 = arith.extui %15 : i1 to i32
    %c0_i32_9 = arith.constant 0 : i32
    %17 = arith.cmpi ne, %16, %c0_i32_9 : i32
    scf.if %17 {
      %c0_10 = arith.constant 0 : index
      %c0_11 = arith.constant 0 : index
      %18 = vector.load %arg6[%c0_10, %c0_11] : memref<8x1xf32, #tpu.memory_space<vmem>>, vector<8x1xf32>
      %19 = math.log %18 : vector<8x1xf32>
      %c0_12 = arith.constant 0 : index
      %c0_13 = arith.constant 0 : index
      %20 = vector.load %arg5[%c0_12, %c0_13] : memref<8x1xf32, #tpu.memory_space<vmem>>, vector<8x1xf32>
      %21 = arith.addf %20, %19 : vector<8x1xf32>
      %c0_14 = arith.constant 0 : index
      %c0_15 = arith.constant 0 : index
      %22 = vector.load %arg8[%c0_14, %c0_15] : memref<8x1xf32, #tpu.memory_space<vmem>>, vector<8x1xf32>
      %cst = arith.constant 9.900000e-01 : f32
      %23 = vector.broadcast %cst : f32 to vector<8x1xf32>
      %24 = arith.mulf %23, %22 : vector<8x1xf32>
      %25 = arith.subf %21, %24 : vector<8x1xf32>
      %c0_16 = arith.constant 0 : index
      %c0_17 = arith.constant 0 : index
      %26 = vector.load %arg7[%c0_16, %c0_17] : memref<8x1xf32, #tpu.memory_space<vmem>>, vector<8x1xf32>
      %cst_18 = arith.constant 3.125000e-04 : f32
      %27 = vector.broadcast %cst_18 : f32 to vector<8x1xf32>
      %28 = arith.mulf %27, %26 : vector<8x1xf32>
      %29 = arith.subf %25, %28 : vector<8x1xf32>
      %c0_19 = arith.constant 0 : index
      %c0_20 = arith.constant 0 : index
      %30 = vector.load %arg4[%c0_19, %c0_20] : memref<8x1xf32, #tpu.memory_space<vmem>>, vector<8x1xf32>
      tpu.vector_store %arg4[%c0_19, %c0_20], %29 {strides = array<i32>} : memref<8x1xf32, #tpu.memory_space<vmem>>, vector<8x1xf32>,
    } else {
    }
    return
  }
  func.func @transform_0(%arg0: i32, %arg1: i32) -> (i32, i32) {
    %c0_i32 = arith.constant 0 : i32
    return %arg0, %arg1 : i32, i32
  }
  func.func @transform_1(%arg0: i32, %arg1: i32) -> (i32, i32) {
    %c0_i32 = arith.constant 0 : i32
    %c0_i32_0 = arith.constant 0 : i32
    return %arg0, %c0_i32 : i32, i32
  }
  func.func @transform_2(%arg0: i32, %arg1: i32) -> (i32, i32) {
    %c0_i32 = arith.constant 0 : i32
    %c0_i32_0 = arith.constant 0 : i32
    return %arg0, %c0_i32 : i32, i32
  }
}

</mosaic_0001>

<llo_original>
// kernel: tpu_custom_call.1
$region0: #{tpu_custom_call.1}
  #allocation0 [shape = 'u32[]', space=smem, size = 0x4, offset = 0x4, fixed_abs, tag = 'smem constant byte address 0x4 - core index']
  #allocation1 [shape = 'u32[72,128]{1,0:T(1,128)}', space=vmem, size = 0x9000, scoped, tag = 'internal scratch']
  #allocation2 [shape = 'f32[8,1]{1,0:T(8,128)}', space=vmem, size = 0x1000, scoped, tag = 'scratch operand']
  #allocation3 [shape = 'f32[8,1]{1,0:T(8,128)}', space=vmem, size = 0x1000, scoped, tag = 'scratch operand']
  #allocation4 [shape = 'f32[8,1]{1,0:T(8,128)}', space=vmem, size = 0x1000, scoped, tag = 'scratch operand']
  #allocation5 [shape = 'f32[8,1]{1,0:T(8,128)}', space=vmem, size = 0x1000, scoped, tag = 'scratch operand']
  %s0 = inlined_call_operand.vmem [shape: f32[8,32], index: 0, kind: input, shape index: {}]
  %s1 = inlined_call_operand.vmem [shape: s32[8,1], index: 1, kind: input, shape index: {}]
  %s2 = inlined_call_operand.vmem [shape: f32[8,1], index: 2, kind: output, shape index: {}]
  %s3 = sld [smem:[#allocation0]]
  $region30: #{tpu_custom_call.1} parent=0
    _
  %s5 = ssub.s32 1, %s3
  %s6 = scalar_select 0, %s5, %s3
  // Predicated region
  $region2: #{tpu_custom_call.1} parent=0 // pred_check
    _
  $region3: #{tpu_custom_call.1} parent=0 // pred_check_branch
    %8 = sbr.rel (0) target = $region5
  $region4: #{tpu_custom_call.1} parent=0 // pred_region
    _
  $region5: #{tpu_custom_call.1} parent=0 // pred_fallthru
    _
  // Predicated region
  $region6: #{tpu_custom_call.1} parent=0 // pred_check
    _
  $region7: #{tpu_custom_call.1} parent=0 // pred_check_branch
    %10 = sbr.rel (0) target = $region9
  $region8: #{tpu_custom_call.1} parent=0 // pred_region
    _
  $region9: #{tpu_custom_call.1} parent=0 // pred_fallthru
    _
  %p11 = scmp.eq.s32.totalorder 0, 0
  // Predicated region
  $region10: #{tpu_custom_call.1} parent=0 // pred_check
    %p12 = pneg %p11
  $region11: #{tpu_custom_call.1} parent=0 // pred_check_branch
    %14 = sbr.rel (%p12) target = $region13
  $region12: #{tpu_custom_call.1} parent=0 // pred_region
    %vm15 = vcmask 7168
    %16 = vst.msk [vmem:[#allocation2] sm:$0xff] %vm15, -1e+30
    %17 = vst.msk [vmem:[#allocation3] sm:$0xff] %vm15, 0.0
    %18 = vst.msk [vmem:[#allocation4] sm:$0xff] %vm15, 0.0
    %19 = vst.msk [vmem:[#allocation5] sm:$0xff] %vm15, 0.0
  $region13: #{tpu_custom_call.1} parent=0 // pred_fallthru
    _
  %v20 = vld [vmem:[%s0] sm:$0xff]
  %v21 = vlaneseq
  %v22 = vand.u32 %v21, 127
  %v23 = vld [vmem:[%s1] sm:$0xff]
  %s24 = smul.u32 0, 128
  %v25 = vstv %s24
  %v26 = vsub.s32 %v23, %v25
  %p27 = scmp.lt.s32.totalorder 0, 0
  // Predicated region
  $region14: #{tpu_custom_call.1} parent=0 // pred_check
    %p28 = pneg %p27
  $region15: #{tpu_custom_call.1} parent=0 // pred_check_branch
    %30 = sbr.rel (%p28) target = $region17
  $region16: #{tpu_custom_call.1} parent=0 // pred_region
    %31 = vmax.xlane.f32.xlu0 %v20
    %v32 = vpop.xlane.xlu0 %31
    %v33 = vld [vmem:[#allocation2] sm:$0xff]
    %v34 = vmax.f32 %v33, %v32
    %v35 = vsub.f32 %v33, %v34
    %v36 = vmul.f32 %v35, 1.442695
    %v37 = vpow.pop %v36
    %v38 = vld [vmem:[#allocation3] sm:$0xff]
    %v39 = vmul.f32 %v37, %v38
    %41 = vset.pattern.permute.xlu0 0
    %42 = vperm.xlu0 %41, %v34
    %v43 = vpop.permute.xlu0 %42
    %v45 = vsub.f32 %v20, %v43
    %v46 = vmul.f32 %v45, 1.442695
    %v47 = vpow.pop %v46
    %48 = vadd.xlane.f32.xlu0 %v47
    %v49 = vpop.xlane.xlu0 %48
    %v50 = vadd.f32 %v39, %v49
    %vm51 = vcmask 7168
    %52 = vst.msk [vmem:[#allocation3] sm:$0xff] %vm51, %v50
    %53 = vst.msk [vmem:[#allocation2] sm:$0xff] %vm51, %v34
    %v54 = vld [vmem:[#allocation4] sm:$0xff]
    %55 = vadd.xlane.f32.xlu0 %v20
    %v56 = vpop.xlane.xlu0 %55
    %v57 = vadd.f32 %v54, %v56
    %58 = vst.msk [vmem:[#allocation4] sm:$0xff] %vm51, %v57
    %v59 = vld [vmem:[#allocation5] sm:$0xff]
    %60 = vset.pattern.permute.xlu0 0
    %61 = vperm.xlu0 %60, %v26
    %v62 = vpop.permute.xlu0 %61
    %vm63 = vcmp.eq.s32.totalorder %v22, %v62
    %v64 = vsel %vm63, %v20, 0.0
    %65 = vadd.xlane.f32.xlu0 %v64
    %v66 = vpop.xlane.xlu0 %65
    %v67 = vadd.f32 %v59, %v66
    %68 = vst.msk [vmem:[#allocation5] sm:$0xff] %vm51, %v67
  $region17: #{tpu_custom_call.1} parent=0 // pred_fallthru
    _
  // Predicated region
  $region18: #{tpu_custom_call.1} parent=0 // pred_check
    %p69 = pneg %p11
  $region19: #{tpu_custom_call.1} parent=0 // pred_check_branch
    %71 = sbr.rel (%p69) target = $region21
  $region20: #{tpu_custom_call.1} parent=0 // pred_region
    %s72 = ssub.s32 32, %s24
    %v73 = vstv %s72
    %vm74 = vcmp.lt.s32.totalorder %v22, %v73
    %v75 = vsel %vm74, %v20, -1e+30
    %v76 = vsel %vm74, %v20, 0.0
    %77 = vmax.xlane.f32.xlu0 %v75
    %v78 = vpop.xlane.xlu0 %77
    %v79 = vld [vmem:[#allocation2] sm:$0xff]
    %v80 = vmax.f32 %v79, %v78
    %v81 = vsub.f32 %v79, %v80
    %v82 = vmul.f32 %v81, 1.442695
    %v83 = vpow.pop %v82
    %v84 = vld [vmem:[#allocation3] sm:$0xff]
    %v85 = vmul.f32 %v83, %v84
    %87 = vset.pattern.permute.xlu0 0
    %88 = vperm.xlu0 %87, %v80
    %v89 = vpop.permute.xlu0 %88
    %v91 = vsub.f32 %v75, %v89
    %v92 = vmul.f32 %v91, 1.442695
    %v93 = vpow.pop %v92
    %94 = vadd.xlane.f32.xlu0 %v93
    %v95 = vpop.xlane.xlu0 %94
    %v96 = vadd.f32 %v85, %v95
    %vm97 = vcmask 7168
    %98 = vst.msk [vmem:[#allocation3] sm:$0xff] %vm97, %v96
    %99 = vst.msk [vmem:[#allocation2] sm:$0xff] %vm97, %v80
    %v100 = vld [vmem:[#allocation4] sm:$0xff]
    %101 = vadd.xlane.f32.xlu0 %v76
    %v102 = vpop.xlane.xlu0 %101
    %v103 = vadd.f32 %v100, %v102
    %104 = vst.msk [vmem:[#allocation4] sm:$0xff] %vm97, %v103
    %v105 = vld [vmem:[#allocation5] sm:$0xff]
    %106 = vset.pattern.permute.xlu0 0
    %107 = vperm.xlu0 %106, %v26
    %v108 = vpop.permute.xlu0 %107
    %vm109 = vcmp.eq.s32.totalorder %v22, %v108
    %v110 = vsel %vm109, %v76, 0.0
    %111 = vadd.xlane.f32.xlu0 %v110
    %v112 = vpop.xlane.xlu0 %111
    %v113 = vadd.f32 %v105, %v112
    %114 = vst.msk [vmem:[#allocation5] sm:$0xff] %vm97, %v113
    %v115 = vld [vmem:[#allocation3] sm:$0xff]
    %v116 = vlog2.pop %v115
    %v117 = vmul.f32 %v116, 0.6931472
    %v118 = vld [vmem:[#allocation2] sm:$0xff]
    %v119 = vadd.f32 %v118, %v117
    %v120 = vld [vmem:[#allocation5] sm:$0xff]
    %v121 = vmul.f32 %v120, 0.99
    %v122 = vsub.f32 %v119, %v121
    %v123 = vld [vmem:[#allocation4] sm:$0xff]
    %v124 = vmul.f32 %v123, 0.0003125
    %v125 = vsub.f32 %v122, %v124
    %126 = vst.msk [vmem:[%s2] sm:$0xff] %vm97, %v125
  $region21: #{tpu_custom_call.1} parent=0 // pred_fallthru
    _
  // Predicated region
  $region22: #{tpu_custom_call.1} parent=0 // pred_check
    _
  $region23: #{tpu_custom_call.1} parent=0 // pred_check_branch
    %128 = sbr.rel (0) target = $region25
  $region24: #{tpu_custom_call.1} parent=0 // pred_region
    _
  $region25: #{tpu_custom_call.1} parent=0 // pred_fallthru
    _
  // Predicated region
  $region26: #{tpu_custom_call.1} parent=0 // pred_check
    _
  $region27: #{tpu_custom_call.1} parent=0 // pred_check_branch
    %130 = sbr.rel (0) target = $region29
  $region28: #{tpu_custom_call.1} parent=0 // pred_region
    _
  $region29: #{tpu_custom_call.1} parent=0 // pred_fallthru
    _

</llo_original>
